<compile_context>
chip_gen: v7x
topology: tpu7x:2x2x1
jax: 0.10.0
libtpu: 0.0.40
codegen_flags: <defaults>
</compile_context>

<pallas_src>
import functools

import jax
import jax.numpy as jnp
from jax.experimental import pallas as pl
from jax.experimental.pallas import tpu as pltpu


def _round_up(x, m):
    return (x + m - 1) // m * m


# ----------------------------- Pallas kernel ------------------------------ #
def _lima_kernel(x_ref, rows_ref, theta_bd_ref, theta_mean_ref, avg_ref,
                 w_in_ref, w_out_ref, b_out_ref,
                 out_ref, hist_ref, *, m_value, eps, mid_feat, hist_feat):
    mm_dtype = theta_bd_ref.dtype          # matmul operand dtype (f32 or bf16)

    # Packed per-feature parameter rows (f32): b_in / b_a / scale / gamma / beta
    rows = rows_ref[...]
    b_in = rows[0:1, :mid_feat]
    b_a = rows[1:2, :mid_feat]
    scale = rows[2:3, :mid_feat]
    gamma = rows[3:4, :hist_feat]
    beta = rows[4:5, :hist_feat]

    # fc_in: [Bt, Kpad] @ [Kpad, H*Hid] (MXU, f32 accumulation) + bias
    h = jnp.dot(x_ref[...], w_in_ref[...],
                preferred_element_type=jnp.float32) + b_in

    # Lima nonlinearity; cos(2h) = 2*cos(h)^2 - 1 -> single transcendental.
    c = jnp.cos(h)
    o = m_value + scale * (-1.0 - b_a + c + b_a * (2.0 * c * c - 1.0))
    o_mm = o.astype(mm_dtype)

    # einsum('bhm,hmn->bhn') as block-diagonal matmul; mean matmul is folded
    # into Theta (theta_mean = theta_bd @ avg), so both dots issue from `o`.
    raw = jnp.dot(o_mm, theta_bd_ref[...], preferred_element_type=jnp.float32)
    mean = jnp.dot(o_mm, theta_mean_ref[...], preferred_element_type=jnp.float32)

    # Per-head LayerNorm (variance via block-diagonal averaging matmul).
    cent = raw - mean
    var = jnp.dot((cent * cent).astype(mm_dtype), avg_ref[...],
                  preferred_element_type=jnp.float32)
    hist_ref[...] = cent * jax.lax.rsqrt(var + eps) * gamma + beta

    # fc_out on the *raw* (pre-LayerNorm) angles, exactly like the PyTorch code
    out_ref[...] = (jnp.dot(raw.astype(mm_dtype), w_out_ref[...],
                            preferred_element_type=jnp.float32) + b_out_ref[...])


# --------------------- one-time parameter preparation ---------------------- #
def prepare_params(params, *, dim, hidden_dim, history_dim_in, history_dim_out,
                   num_heads, m_value=1.0, matmul_dtype=jnp.bfloat16):
    """Hoists all parameter-derived glue out of the per-call path."""
    H, D, Hin, Hid, Hout = num_heads, dim, history_dim_in, hidden_dim, history_dim_out
    in_feat = H * (D + Hin)
    mid_feat = H * Hid
    hist_feat = H * Hout
    K_pad = _round_up(in_feat, 128)                 # lane-aligned K (320 -> 384)
    row_w = _round_up(max(mid_feat, hist_feat), 128)
    f32 = jnp.float32

    Theta = params["Theta"].astype(f32)             # [H, Hid, Hout]
    theta_bd = jax.scipy.linalg.block_diag(*[Theta[h] for h in range(H)])
    avg_mat = jax.scipy.linalg.block_diag(
        *([jnp.ones((Hout, Hout), f32) / Hout] * H))
    theta_mean_bd = theta_bd @ avg_mat              # fold mean into Theta

    w_in = jnp.zeros((K_pad, mid_feat), f32).at[:in_feat].set(
        params["w_in"].astype(f32))

    # Precomputed elementwise Lima params + tiled LayerNorm affine, packed into
    # a single sublane-padded (8, row_w) operand.
    b_a = ((jax.nn.sigmoid(params["lima_shape"].astype(f32)) - 0.5) * 0.5).reshape(-1)
    scale = (m_value / (2.0 * (jnp.exp(params["proportion"].astype(f32)) + 1.0))).reshape(-1)
    rows = jnp.zeros((8, row_w), f32)
    rows = rows.at[0, :mid_feat].set(params["b_in"].astype(f32))
    rows = rows.at[1, :mid_feat].set(b_a)
    rows = rows.at[2, :mid_feat].set(scale)
    rows = rows.at[3, :hist_feat].set(jnp.tile(params["ln_gamma"].astype(f32), (H,)))
    rows = rows.at[4, :hist_feat].set(jnp.tile(params["ln_beta"].astype(f32), (H,)))

    return {
        "w_in": w_in.astype(matmul_dtype),
        "theta_bd": theta_bd.astype(matmul_dtype),
        "theta_mean_bd": theta_mean_bd.astype(matmul_dtype),
        "avg_mat": avg_mat.astype(matmul_dtype),
        "w_out": params["w_out"].astype(matmul_dtype),
        "b_out": params["b_out"].astype(f32).reshape(1, -1),
        "rows": rows,
    }


# ------------------------------ JAX wrapper ------------------------------- #
def multihead_lima_forward(theta, histories, prep, *, dim, hidden_dim,
                           history_dim_in, history_dim_out, num_heads,
                           m_value=1.0, eps=1e-5):
    """theta: [B, dim] f32 ; histories: [B, num_heads, history_dim_in] f32."""
    B = theta.shape[0]
    H, D, Hin, Hid, Hout = num_heads, dim, history_dim_in, hidden_dim, history_dim_out
    in_feat = H * (D + Hin)
    mid_feat = H * Hid
    hist_feat = H * Hout
    out_feat = H * D
    K_pad = prep["w_in"].shape[0]
    row_w = prep["rows"].shape[1]
    mm_dtype = prep["w_in"].dtype

    # Per-call glue: concat + flatten + pad (batch to sublane/tile, K to 128).
    x = jnp.concatenate(
        [jnp.broadcast_to(theta[:, None, :], (B, H, D)), histories], axis=-1
    ).reshape(B, in_feat)
    B_tile = 128 if B >= 128 else _round_up(B, 8)
    B_pad = _round_up(B, B_tile)
    x = jnp.pad(x, ((0, B_pad - B), (0, K_pad - in_feat))).astype(mm_dtype)

    grid = (B_pad // B_tile,)
    const = lambda i: (0, 0)          # weights: same block every step (no re-DMA)

    kernel = functools.partial(_lima_kernel, m_value=float(m_value),
                               eps=float(eps), mid_feat=mid_feat,
                               hist_feat=hist_feat)

    flops = 2 * B_pad * (K_pad * mid_feat + 2 * mid_feat * hist_feat
                         + hist_feat * hist_feat + hist_feat * out_feat)
    bytes_accessed = sum(int(a.size) * a.dtype.itemsize for a in
                         (x, prep["rows"], prep["theta_bd"], prep["theta_mean_bd"],
                          prep["avg_mat"], prep["w_in"], prep["w_out"], prep["b_out"]))
    bytes_accessed += B_pad * (out_feat + hist_feat) * 4

    out_flat, hist_flat = pl.pallas_call(
        kernel,
        out_shape=(jax.ShapeDtypeStruct((B_pad, out_feat), jnp.float32),
                   jax.ShapeDtypeStruct((B_pad, hist_feat), jnp.float32)),
        grid=grid,
        in_specs=[
            pl.BlockSpec((B_tile, K_pad), lambda i: (i, 0)),      # x (streamed)
            pl.BlockSpec((8, row_w), const),                      # packed rows
            pl.BlockSpec((mid_feat, hist_feat), const),           # theta_bd
            pl.BlockSpec((mid_feat, hist_feat), const),           # theta_mean_bd
            pl.BlockSpec((hist_feat, hist_feat), const),          # avg_mat
            pl.BlockSpec((K_pad, mid_feat), const),               # w_in
            pl.BlockSpec((hist_feat, out_feat), const),           # w_out
            pl.BlockSpec((1, out_feat), const),                   # b_out
        ],
        out_specs=(
            pl.BlockSpec((B_tile, out_feat), lambda i: (i, 0)),
            pl.BlockSpec((B_tile, hist_feat), lambda i: (i, 0)),
        ),
        compiler_params=pltpu.CompilerParams(dimension_semantics=("parallel",)),
        cost_estimate=pl.CostEstimate(flops=flops,
                                      transcendentals=B_pad * mid_feat,
                                      bytes_accessed=bytes_accessed),
    )(x, prep["rows"], prep["theta_bd"], prep["theta_mean_bd"],
      prep["avg_mat"], prep["w_in"], prep["w_out"], prep["b_out"])

    return (out_flat[:B].reshape(B, H, D),
            hist_flat[:B].reshape(B, H, Hout))


# --------------------------- pure-JAX reference ---------------------------- #
def reference_forward(theta, histories, params,
                      *, dim, hidden_dim, history_dim_in,
                      history_dim_out, num_heads, m_value=1.0, eps=1e-5):
    B = theta.shape[0]
    H, D, Hin, Hid, Hout = num_heads, dim, history_dim_in, hidden_dim, history_dim_out
    total_in = jnp.concatenate(
        [jnp.broadcast_to(theta[:, None, :], (B, H, D)), histories], axis=-1
    ).reshape(B, -1)
    h = (total_in @ params["w_in"] + params["b_in"]).reshape(B, H, Hid)
    b_a = (jax.nn.sigmoid(params["lima_shape"]) - 0.5) / 2.0
    scale = m_value / (2.0 * (jnp.exp(params["proportion"]) + 1.0))
    o = m_value + scale * (-1.0 - b_a + jnp.cos(h) + b_a * jnp.cos(2.0 * h))
    raw = jnp.einsum("bhm,hmn->bhn", o, params["Theta"])
    mean = jnp.mean(raw, axis=-1, keepdims=True)
    var = jnp.mean((raw - mean) ** 2, axis=-1, keepdims=True)
    nh = (raw - mean) * jax.lax.rsqrt(var + eps) * params["ln_gamma"] + params["ln_beta"]
    out = (raw.reshape(B, -1) @ params["w_out"] + params["b_out"]).reshape(B, H, D)
    return out, nh


# --------------------------------- main ------------------------------------ #
if __name__ == "__main__":
    # Module hyperparameters (PyTorch defaults)
    DIM, HID, HIN, HOUT, NH = 64, 32, 16, 32, 4
    B = 8

    key = jax.random.PRNGKey(0)
    ks = jax.random.split(key, 10)

    in_feat = NH * (DIM + HIN)      # 320
    mid_feat = NH * HID             # 128
    out_feat = NH * DIM             # 256

    params = {
        "proportion": jax.random.uniform(ks[0], (NH, HID), jnp.float32),
        "lima_shape": jax.random.uniform(ks[1], (NH, HID), jnp.float32),
        # fc_in weight stored transposed: [in_features, out_features]
        "w_in": jax.random.uniform(ks[2], (in_feat, mid_feat), jnp.float32,
                                   -1.0, 1.0) / jnp.sqrt(in_feat),
        "b_in": jax.random.uniform(ks[3], (mid_feat,), jnp.float32,
                                   -1.0, 1.0) / jnp.sqrt(in_feat),
        "Theta": jax.random.uniform(ks[4], (NH, HID, HOUT), jnp.float32) * 2 * jnp.pi - jnp.pi,
        "w_out": jax.random.uniform(ks[5], (NH * HOUT, out_feat), jnp.float32,
                                    -1.0, 1.0) / jnp.sqrt(NH * HOUT),
        "b_out": jax.random.uniform(ks[6], (out_feat,), jnp.float32,
                                    -1.0, 1.0) / jnp.sqrt(NH * HOUT),
        "ln_gamma": jnp.ones((HOUT,), jnp.float32),
        "ln_beta": jnp.zeros((HOUT,), jnp.float32),
    }

    theta = jax.random.normal(ks[7], (B, DIM), jnp.float32)
    histories = jax.random.normal(ks[8], (B, NH, HIN), jnp.float32)

    kwargs = dict(dim=DIM, hidden_dim=HID, history_dim_in=HIN,
                  history_dim_out=HOUT, num_heads=NH, m_value=1.0)

    out_ref, hist_ref = reference_forward(theta, histories, params, **kwargs)

    fwd = jax.jit(functools.partial(multihead_lima_forward, **kwargs))

    # f32 matmul path: exact-ish, tight tolerance.
    prep_f32 = prepare_params(params, matmul_dtype=jnp.float32, **kwargs)
    out32, hist32 = fwd(theta, histories, prep_f32)
    out32, hist32 = jax.block_until_ready((out32, hist32))
    assert out32.shape == (B, NH, DIM) and hist32.shape == (B, NH, HOUT)
    assert jnp.allclose(out32, out_ref, atol=1e-4, rtol=1e-4)
    assert jnp.allclose(hist32, hist_ref, atol=1e-4, rtol=1e-4)

    # bf16-weight path (halved weight DMA, native MXU rate): looser tolerance.
    prep_bf16 = prepare_params(params, matmul_dtype=jnp.bfloat16, **kwargs)
    out16, hist16 = fwd(theta, histories, prep_bf16)
    out16, hist16 = jax.block_until_ready((out16, hist16))
    assert jnp.allclose(out16, out_ref, atol=5e-2, rtol=5e-2)
    assert jnp.allclose(hist16, hist_ref, atol=5e-2, rtol=5e-2)

    print("KERNEL_OK")
</pallas_src>

<mosaic_0001>
module attributes {stable_mosaic.version = 11 : i64} {
  func.func @_lima_kernel(%arg0: i32, %arg1: memref<8x384xf32, #tpu.memory_space<vmem>>, %arg2: memref<8x128xf32, #tpu.memory_space<vmem>>, %arg3: memref<128x128xf32, #tpu.memory_space<vmem>>, %arg4: memref<128x128xf32, #tpu.memory_space<vmem>>, %arg5: memref<128x128xf32, #tpu.memory_space<vmem>>, %arg6: memref<384x128xf32, #tpu.memory_space<vmem>>, %arg7: memref<128x256xf32, #tpu.memory_space<vmem>>, %arg8: memref<1x256xf32, #tpu.memory_space<vmem>>, %arg9: memref<8x256xf32, #tpu.memory_space<vmem>>, %arg10: memref<8x128xf32, #tpu.memory_space<vmem>>) attributes {dimension_semantics = [#tpu.dimension_semantics<parallel>], iteration_bounds = array<i64: 1>, scalar_prefetch = 0 : i64, scratch_operands = 0 : i64, tpu.core_type = #tpu.core_type<tc>, window_params = [{transform_indices = @transform_0, window_bounds = array<i64: 8, 384>}, {pipeline_mode = #tpu.pipeline_mode<synchronous>, transform_indices = @transform_1, window_bounds = array<i64: 8, 128>}, {pipeline_mode = #tpu.pipeline_mode<synchronous>, transform_indices = @transform_2, window_bounds = array<i64: 128, 128>}, {pipeline_mode = #tpu.pipeline_mode<synchronous>, transform_indices = @transform_3, window_bounds = array<i64: 128, 128>}, {pipeline_mode = #tpu.pipeline_mode<synchronous>, transform_indices = @transform_4, window_bounds = array<i64: 128, 128>}, {pipeline_mode = #tpu.pipeline_mode<synchronous>, transform_indices = @transform_5, window_bounds = array<i64: 384, 128>}, {pipeline_mode = #tpu.pipeline_mode<synchronous>, transform_indices = @transform_6, window_bounds = array<i64: 128, 256>}, {pipeline_mode = #tpu.pipeline_mode<synchronous>, transform_indices = @transform_7, window_bounds = array<i64: 1, 256>}, {transform_indices = @transform_8, window_bounds = array<i64: 8, 256>}, {transform_indices = @transform_9, window_bounds = array<i64: 8, 128>}]} {
    %c0 = arith.constant 0 : index
    %c0_0 = arith.constant 0 : index
    %0 = vector.load %arg2[%c0, %c0_0] : memref<8x128xf32, #tpu.memory_space<vmem>>, vector<8x128xf32>
    %1 = vector.extract_strided_slice %0 {offsets = [0, 0], sizes = [1, 128], strides = [1, 1]} : vector<8x128xf32> to vector<1x128xf32>
    %2 = vector.extract_strided_slice %0 {offsets = [1, 0], sizes = [1, 128], strides = [1, 1]} : vector<8x128xf32> to vector<1x128xf32>
    %3 = vector.extract_strided_slice %0 {offsets = [2, 0], sizes = [1, 128], strides = [1, 1]} : vector<8x128xf32> to vector<1x128xf32>
    %4 = vector.extract_strided_slice %0 {offsets = [3, 0], sizes = [1, 128], strides = [1, 1]} : vector<8x128xf32> to vector<1x128xf32>
    %5 = vector.extract_strided_slice %0 {offsets = [4, 0], sizes = [1, 128], strides = [1, 1]} : vector<8x128xf32> to vector<1x128xf32>
    %c0_1 = arith.constant 0 : index
    %c0_2 = arith.constant 0 : index
    %6 = vector.load %arg1[%c0_1, %c0_2] : memref<8x384xf32, #tpu.memory_space<vmem>>, vector<8x384xf32>
    %c0_3 = arith.constant 0 : index
    %c0_4 = arith.constant 0 : index
    %7 = vector.load %arg6[%c0_3, %c0_4] : memref<384x128xf32, #tpu.memory_space<vmem>>, vector<384x128xf32>
    %cst = arith.constant dense<0.000000e+00> : vector<8x128xf32>
    %8 = tpu.matmul %6, %7, %cst {dimension_numbers = #tpu.dot_dimension_numbers<[1], [0], [0], [1], [0, 0, 1, 1], [], []>} : vector<8x384xf32>, vector<384x128xf32>, vector<8x128xf32> -> vector<8x128xf32>
    %9 = vector.broadcast %1 : vector<1x128xf32> to vector<8x128xf32>
    %10 = arith.addf %8, %9 : vector<8x128xf32>
    %11 = math.cos %10 : vector<8x128xf32>
    %cst_5 = arith.constant -1.000000e+00 : f32
    %12 = vector.broadcast %cst_5 : f32 to vector<1x128xf32>
    %13 = arith.subf %12, %2 : vector<1x128xf32>
    %14 = vector.broadcast %13 : vector<1x128xf32> to vector<8x128xf32>
    %15 = arith.addf %14, %11 : vector<8x128xf32>
    %cst_6 = arith.constant 2.000000e+00 : f32
    %16 = vector.broadcast %cst_6 : f32 to vector<8x128xf32>
    %17 = arith.mulf %16, %11 : vector<8x128xf32>
    %18 = arith.mulf %17, %11 : vector<8x128xf32>
    %cst_7 = arith.constant 1.000000e+00 : f32
    %19 = vector.broadcast %cst_7 : f32 to vector<8x128xf32>
    %20 = arith.subf %18, %19 : vector<8x128xf32>
    %21 = vector.broadcast %2 : vector<1x128xf32> to vector<8x128xf32>
    %22 = arith.mulf %21, %20 : vector<8x128xf32>
    %23 = arith.addf %15, %22 : vector<8x128xf32>
    %24 = vector.broadcast %3 : vector<1x128xf32> to vector<8x128xf32>
    %25 = arith.mulf %24, %23 : vector<8x128xf32>
    %cst_8 = arith.constant 1.000000e+00 : f32
    %26 = vector.broadcast %cst_8 : f32 to vector<8x128xf32>
    %27 = arith.addf %26, %25 : vector<8x128xf32>
    %c0_9 = arith.constant 0 : index
    %c0_10 = arith.constant 0 : index
    %28 = vector.load %arg3[%c0_9, %c0_10] : memref<128x128xf32, #tpu.memory_space<vmem>>, vector<128x128xf32>
    %cst_11 = arith.constant dense<0.000000e+00> : vector<8x128xf32>
    %29 = tpu.matmul %27, %28, %cst_11 {dimension_numbers = #tpu.dot_dimension_numbers<[1], [0], [0], [1], [0, 0, 1, 1], [], []>} : vector<8x128xf32>, vector<128x128xf32>, vector<8x128xf32> -> vector<8x128xf32>
    %c0_12 = arith.constant 0 : index
    %c0_13 = arith.constant 0 : index
    %30 = vector.load %arg4[%c0_12, %c0_13] : memref<128x128xf32, #tpu.memory_space<vmem>>, vector<128x128xf32>
    %cst_14 = arith.constant dense<0.000000e+00> : vector<8x128xf32>
    %31 = tpu.matmul %27, %30, %cst_14 {dimension_numbers = #tpu.dot_dimension_numbers<[1], [0], [0], [1], [0, 0, 1, 1], [], []>} : vector<8x128xf32>, vector<128x128xf32>, vector<8x128xf32> -> vector<8x128xf32>
    %32 = arith.subf %29, %31 : vector<8x128xf32>
    %33 = arith.mulf %32, %32 : vector<8x128xf32>
    %c0_15 = arith.constant 0 : index
    %c0_16 = arith.constant 0 : index
    %34 = vector.load %arg5[%c0_15, %c0_16] : memref<128x128xf32, #tpu.memory_space<vmem>>, vector<128x128xf32>
    %cst_17 = arith.constant dense<0.000000e+00> : vector<8x128xf32>
    %35 = tpu.matmul %33, %34, %cst_17 {dimension_numbers = #tpu.dot_dimension_numbers<[1], [0], [0], [1], [0, 0, 1, 1], [], []>} : vector<8x128xf32>, vector<128x128xf32>, vector<8x128xf32> -> vector<8x128xf32>
    %cst_18 = arith.constant 9.99999974E-6 : f32
    %36 = vector.broadcast %cst_18 : f32 to vector<8x128xf32>
    %37 = arith.addf %35, %36 : vector<8x128xf32>
    %38 = math.rsqrt %37 : vector<8x128xf32>
    %39 = arith.mulf %32, %38 : vector<8x128xf32>
    %40 = vector.broadcast %4 : vector<1x128xf32> to vector<8x128xf32>
    %41 = arith.mulf %39, %40 : vector<8x128xf32>
    %42 = vector.broadcast %5 : vector<1x128xf32> to vector<8x128xf32>
    %43 = arith.addf %41, %42 : vector<8x128xf32>
    %c0_19 = arith.constant 0 : index
    %c0_20 = arith.constant 0 : index
    %44 = vector.load %arg10[%c0_19, %c0_20] : memref<8x128xf32, #tpu.memory_space<vmem>>, vector<8x128xf32>
    tpu.vector_store %arg10[%c0_19, %c0_20], %43 {strides = array<i32>} : memref<8x128xf32, #tpu.memory_space<vmem>>, vector<8x128xf32>,
    %c0_21 = arith.constant 0 : index
    %c0_22 = arith.constant 0 : index
    %45 = vector.load %arg7[%c0_21, %c0_22] : memref<128x256xf32, #tpu.memory_space<vmem>>, vector<128x256xf32>
    %cst_23 = arith.constant dense<0.000000e+00> : vector<8x256xf32>
    %46 = tpu.matmul %29, %45, %cst_23 {dimension_numbers = #tpu.dot_dimension_numbers<[1], [0], [0], [1], [0, 0, 1, 1], [], []>} : vector<8x128xf32>, vector<128x256xf32>, vector<8x256xf32> -> vector<8x256xf32>
    %c0_24 = arith.constant 0 : index
    %c0_25 = arith.constant 0 : index
    %47 = vector.load %arg8[%c0_24, %c0_25] : memref<1x256xf32, #tpu.memory_space<vmem>>, vector<1x256xf32>
    %48 = vector.broadcast %47 : vector<1x256xf32> to vector<8x256xf32>
    %49 = arith.addf %46, %48 : vector<8x256xf32>
    %c0_26 = arith.constant 0 : index
    %c0_27 = arith.constant 0 : index
    %50 = vector.load %arg9[%c0_26, %c0_27] : memref<8x256xf32, #tpu.memory_space<vmem>>, vector<8x256xf32>
    tpu.vector_store %arg9[%c0_26, %c0_27], %49 {strides = array<i32>} : memref<8x256xf32, #tpu.memory_space<vmem>>, vector<8x256xf32>,
    return
  }
  func.func @transform_0(%arg0: i32) -> (i32, i32) {
    %c0_i32 = arith.constant 0 : i32
    %c0_i32_0 = arith.constant 0 : i32
    return %arg0, %c0_i32 : i32, i32
  }
  func.func @transform_1(%arg0: i32) -> (i32, i32) {
    %c0_i32 = arith.constant 0 : i32
    %c0_i32_0 = arith.constant 0 : i32
    %c0_i32_1 = arith.constant 0 : i32
    return %c0_i32, %c0_i32_0 : i32, i32
  }
  func.func @transform_2(%arg0: i32) -> (i32, i32) {
    %c0_i32 = arith.constant 0 : i32
    %c0_i32_0 = arith.constant 0 : i32
    %c0_i32_1 = arith.constant 0 : i32
    return %c0_i32, %c0_i32_0 : i32, i32
  }
  func.func @transform_3(%arg0: i32) -> (i32, i32) {
    %c0_i32 = arith.constant 0 : i32
    %c0_i32_0 = arith.constant 0 : i32
    %c0_i32_1 = arith.constant 0 : i32
    return %c0_i32, %c0_i32_0 : i32, i32
  }
  func.func @transform_4(%arg0: i32) -> (i32, i32) {
    %c0_i32 = arith.constant 0 : i32
    %c0_i32_0 = arith.constant 0 : i32
    %c0_i32_1 = arith.constant 0 : i32
    return %c0_i32, %c0_i32_0 : i32, i32
  }
  func.func @transform_5(%arg0: i32) -> (i32, i32) {
    %c0_i32 = arith.constant 0 : i32
    %c0_i32_0 = arith.constant 0 : i32
    %c0_i32_1 = arith.constant 0 : i32
    return %c0_i32, %c0_i32_0 : i32, i32
  }
  func.func @transform_6(%arg0: i32) -> (i32, i32) {
    %c0_i32 = arith.constant 0 : i32
    %c0_i32_0 = arith.constant 0 : i32
    %c0_i32_1 = arith.constant 0 : i32
    return %c0_i32, %c0_i32_0 : i32, i32
  }
  func.func @transform_7(%arg0: i32) -> (i32, i32) {
    %c0_i32 = arith.constant 0 : i32
    %c0_i32_0 = arith.constant 0 : i32
    %c0_i32_1 = arith.constant 0 : i32
    return %c0_i32, %c0_i32_0 : i32, i32
  }
  func.func @transform_8(%arg0: i32) -> (i32, i32) {
    %c0_i32 = arith.constant 0 : i32
    %c0_i32_0 = arith.constant 0 : i32
    return %arg0, %c0_i32 : i32, i32
  }
  func.func @transform_9(%arg0: i32) -> (i32, i32) {
    %c0_i32 = arith.constant 0 : i32
    %c0_i32_0 = arith.constant 0 : i32
    return %arg0, %c0_i32 : i32, i32
  }
}

</mosaic_0001>

<llo_original>
// kernel: multihead_lima_forward.1
$region0: #{multihead_lima_forward.1}
  #allocation0 [shape = 'u32[]', space=smem, size = 0x4, offset = 0x4, fixed_abs, tag = 'smem constant byte address 0x4 - core index']
  #allocation1 [shape = 'u32[144,128]{1,0:T(1,128)}', space=vmem, size = 0x12000, scoped, tag = 'internal scratch']
  %s0 = inlined_call_operand.vmem [shape: f32[8,384], index: 0, kind: input, shape index: {}]
  %s1 = inlined_call_operand.vmem [shape: f32[8,128], index: 1, kind: input, shape index: {}]
  %s2 = inlined_call_operand.hbm [shape: f32[128,128], index: 2, kind: input, shape index: {}]
  %s3 = inlined_call_operand.hbm [shape: f32[128,128], index: 3, kind: input, shape index: {}]
  %s4 = inlined_call_operand.hbm [shape: f32[128,128], index: 4, kind: input, shape index: {}]
  %s5 = inlined_call_operand.hbm [shape: f32[384,128], index: 5, kind: input, shape index: {}]
  %s6 = inlined_call_operand.vmem [shape: f32[128,256], index: 6, kind: input, shape index: {}]
  %s7 = inlined_call_operand.vmem [shape: f32[1,256], index: 7, kind: input, shape index: {}]
  %s8 = inlined_call_operand.vmem [shape: f32[8,256], index: 8, kind: output, shape index: {0}]
  %s9 = inlined_call_operand.vmem [shape: f32[8,128], index: 9, kind: output, shape index: {1}]
  %10 = xla_tuple %s8, %s9
  %s11 = sld [smem:[#allocation0]]
  $region66: #{multihead_lima_forward.1} parent=0
    _
  %s13 = ssub.s32 1, %s11
  %s14 = scalar_select 0, %s13, %s11
  $region1: #{multihead_lima_forward.1} parent=0
    #allocation2 [shape = 'u8[65536]{0}', space=vmem, size = 0x10000, scoped, tag = 'input window, operand 2, single buffered']
    #allocation3 [shape = 's32[1]{0}', space=sflag, size = 0x4, scoped, tag = 'scoped memory for multihead_lima_forward.1']
    #allocation4 [shape = 'u8[65536]{0}', space=vmem, size = 0x10000, scoped, tag = 'input window, operand 3, single buffered']
    #allocation5 [shape = 's32[1]{0}', space=sflag, size = 0x4, scoped, tag = 'scoped memory for multihead_lima_forward.1']
    #allocation6 [shape = 'u8[65536]{0}', space=vmem, size = 0x10000, scoped, tag = 'input window, operand 4, single buffered']
    #allocation7 [shape = 'u8[196608]{0}', space=vmem, size = 0x30000, scoped, tag = 'input window, operand 5, single buffered']
    #allocation8 [shape = 's32[1]{0}', space=sflag, size = 0x4, scoped, tag = 'scoped memory for multihead_lima_forward.1']
    %15 = vsyncpa [#allocation3], 0
    %16 = vsyncpa [#allocation5], 0
    %17 = vsyncpa [#allocation8], 0
    // Predicated region
    $region2: #{multihead_lima_forward.1} parent=1 // pred_check
      _
    $region3: #{multihead_lima_forward.1} parent=1 // pred_check_branch
      %19 = sbr.rel (0) target = $region5
    $region4: #{multihead_lima_forward.1} parent=1 // pred_region
      _
    $region5: #{multihead_lima_forward.1} parent=1 // pred_fallthru
      _
    // Predicated region
    $region6: #{multihead_lima_forward.1} parent=1 // pred_check
      _
    $region7: #{multihead_lima_forward.1} parent=1 // pred_check_branch
      %21 = sbr.rel (0) target = $region9
    $region8: #{multihead_lima_forward.1} parent=1 // pred_region
      _
    $region9: #{multihead_lima_forward.1} parent=1 // pred_fallthru
      _
    // Predicated region
    $region10: #{multihead_lima_forward.1} parent=1 // pred_check
      _
    $region11: #{multihead_lima_forward.1} parent=1 // pred_check_branch
      %23 = sbr.rel (0) target = $region13
    $region12: #{multihead_lima_forward.1} parent=1 // pred_region
      %s25 = ssub.s32 2048, 2048
      %26 = vsyncadd [#allocation3], %s25
      %s27 = sshll.u32 [#allocation2], 4
      %s28 = int_to_ptr.vmem [resolvable:$true] %s27
      %33 = dma.hbm_to_vmem [thread:$0]  %s2, 2048, %s28, [#allocation3], 128, 128, 8
    $region13: #{multihead_lima_forward.1} parent=1 // pred_fallthru
      _
    // Predicated region
    $region14: #{multihead_lima_forward.1} parent=1 // pred_check
      _
    $region15: #{multihead_lima_forward.1} parent=1 // pred_check_branch
      %35 = sbr.rel (0) target = $region17
    $region16: #{multihead_lima_forward.1} parent=1 // pred_region
      %s37 = ssub.s32 2048, 2048
      %38 = vsyncadd [#allocation5], %s37
      %s39 = sshll.u32 [#allocation4], 4
      %s40 = int_to_ptr.vmem [resolvable:$true] %s39
      %45 = dma.hbm_to_vmem [thread:$0]  %s3, 2048, %s40, [#allocation5], 128, 128, 8
    $region17: #{multihead_lima_forward.1} parent=1 // pred_fallthru
      _
    // Predicated region
    $region18: #{multihead_lima_forward.1} parent=1 // pred_check
      _
    $region19: #{multihead_lima_forward.1} parent=1 // pred_check_branch
      %47 = sbr.rel (0) target = $region21
    $region20: #{multihead_lima_forward.1} parent=1 // pred_region
      %s49 = ssub.s32 2048, 2048
      %50 = vsyncadd [#allocation5], %s49
      %s51 = sshll.u32 [#allocation6], 4
      %s52 = int_to_ptr.vmem [resolvable:$true] %s51
      %57 = dma.hbm_to_vmem [thread:$0]  %s4, 2048, %s52, [#allocation5], 128, 128, 8
    $region21: #{multihead_lima_forward.1} parent=1 // pred_fallthru
      _
    // Predicated region
    $region22: #{multihead_lima_forward.1} parent=1 // pred_check
      _
    $region23: #{multihead_lima_forward.1} parent=1 // pred_check_branch
      %59 = sbr.rel (0) target = $region25
    $region24: #{multihead_lima_forward.1} parent=1 // pred_region
      %s61 = ssub.s32 6144, 6144
      %62 = vsyncadd [#allocation8], %s61
      %s63 = sshll.u32 [#allocation7], 4
      %s64 = int_to_ptr.vmem [resolvable:$true] %s63
      %69 = dma.hbm_to_vmem [thread:$0]  %s5, 6144, %s64, [#allocation8], 128, 128, 8
    $region25: #{multihead_lima_forward.1} parent=1 // pred_fallthru
      _
    // Predicated region
    $region26: #{multihead_lima_forward.1} parent=1 // pred_check
      _
    $region27: #{multihead_lima_forward.1} parent=1 // pred_check_branch
      %71 = sbr.rel (0) target = $region29
    $region28: #{multihead_lima_forward.1} parent=1 // pred_region
      _
    $region29: #{multihead_lima_forward.1} parent=1 // pred_fallthru
      _
    // Predicated region
    $region30: #{multihead_lima_forward.1} parent=1 // pred_check
      _
    $region31: #{multihead_lima_forward.1} parent=1 // pred_check_branch
      %73 = sbr.rel (0) target = $region33
    $region32: #{multihead_lima_forward.1} parent=1 // pred_region
      _
    $region33: #{multihead_lima_forward.1} parent=1 // pred_fallthru
      _
    // Predicated region
    $region34: #{multihead_lima_forward.1} parent=1 // pred_check
      _
    $region35: #{multihead_lima_forward.1} parent=1 // pred_check_branch
      %75 = sbr.rel (0) target = $region37
    $region36: #{multihead_lima_forward.1} parent=1 // pred_region
      %76 = dma.done [#allocation3], 2048
    $region37: #{multihead_lima_forward.1} parent=1 // pred_fallthru
      _
    // Predicated region
    $region38: #{multihead_lima_forward.1} parent=1 // pred_check
      _
    $region39: #{multihead_lima_forward.1} parent=1 // pred_check_branch
      %78 = sbr.rel (0) target = $region41
    $region40: #{multihead_lima_forward.1} parent=1 // pred_region
      %79 = dma.done [#allocation5], 2048
    $region41: #{multihead_lima_forward.1} parent=1 // pred_fallthru
      _
    // Predicated region
    $region42: #{multihead_lima_forward.1} parent=1 // pred_check
      _
    $region43: #{multihead_lima_forward.1} parent=1 // pred_check_branch
      %81 = sbr.rel (0) target = $region45
    $region44: #{multihead_lima_forward.1} parent=1 // pred_region
      %82 = dma.done [#allocation5], 2048
    $region45: #{multihead_lima_forward.1} parent=1 // pred_fallthru
      _
    // Predicated region
    $region46: #{multihead_lima_forward.1} parent=1 // pred_check
      _
    $region47: #{multihead_lima_forward.1} parent=1 // pred_check_branch
      %84 = sbr.rel (0) target = $region49
    $region48: #{multihead_lima_forward.1} parent=1 // pred_region
      %85 = dma.done [#allocation8], 6144
    $region49: #{multihead_lima_forward.1} parent=1 // pred_fallthru
      _
    %v86 = vld [vmem:[%s1] sm:$0xff]
    %v87 = vld [vmem:[%s0] sm:$0xff]
    %v88 = vld [vmem:[%s0 + $0x8] sm:$0xff]
    %v89 = vld [vmem:[%s0 + $0x10] sm:$0xff]
    %v90 = vld [vmem:[#allocation7] sm:$0xff]
    %v91 = vld [vmem:[#allocation7 + $0x8] sm:$0xff]
    %v92 = vld [vmem:[#allocation7 + $0x10] sm:$0xff]
    %v93 = vld [vmem:[#allocation7 + $0x18] sm:$0xff]
    %v94 = vld [vmem:[#allocation7 + $0x20] sm:$0xff]
    %v95 = vld [vmem:[#allocation7 + $0x28] sm:$0xff]
    %v96 = vld [vmem:[#allocation7 + $0x30] sm:$0xff]
    %v97 = vld [vmem:[#allocation7 + $0x38] sm:$0xff]
    %v98 = vld [vmem:[#allocation7 + $0x40] sm:$0xff]
    %v99 = vld [vmem:[#allocation7 + $0x48] sm:$0xff]
    %v100 = vld [vmem:[#allocation7 + $0x50] sm:$0xff]
    %v101 = vld [vmem:[#allocation7 + $0x58] sm:$0xff]
    %v102 = vld [vmem:[#allocation7 + $0x60] sm:$0xff]
    %v103 = vld [vmem:[#allocation7 + $0x68] sm:$0xff]
    %v104 = vld [vmem:[#allocation7 + $0x70] sm:$0xff]
    %v105 = vld [vmem:[#allocation7 + $0x78] sm:$0xff]
    %v106 = vld [vmem:[#allocation7 + $0x80] sm:$0xff]
    %v107 = vld [vmem:[#allocation7 + $0x88] sm:$0xff]
    %v108 = vld [vmem:[#allocation7 + $0x90] sm:$0xff]
    %v109 = vld [vmem:[#allocation7 + $0x98] sm:$0xff]
    %v110 = vld [vmem:[#allocation7 + $0xa0] sm:$0xff]
    %v111 = vld [vmem:[#allocation7 + $0xa8] sm:$0xff]
    %v112 = vld [vmem:[#allocation7 + $0xb0] sm:$0xff]
    %v113 = vld [vmem:[#allocation7 + $0xb8] sm:$0xff]
    %v114 = vld [vmem:[#allocation7 + $0xc0] sm:$0xff]
    %v115 = vld [vmem:[#allocation7 + $0xc8] sm:$0xff]
    %v116 = vld [vmem:[#allocation7 + $0xd0] sm:$0xff]
    %v117 = vld [vmem:[#allocation7 + $0xd8] sm:$0xff]
    %v118 = vld [vmem:[#allocation7 + $0xe0] sm:$0xff]
    %v119 = vld [vmem:[#allocation7 + $0xe8] sm:$0xff]
    %v120 = vld [vmem:[#allocation7 + $0xf0] sm:$0xff]
    %v121 = vld [vmem:[#allocation7 + $0xf8] sm:$0xff]
    %v122 = vld [vmem:[#allocation7 + $0x100] sm:$0xff]
    %v123 = vld [vmem:[#allocation7 + $0x108] sm:$0xff]
    %v124 = vld [vmem:[#allocation7 + $0x110] sm:$0xff]
    %v125 = vld [vmem:[#allocation7 + $0x118] sm:$0xff]
    %v126 = vld [vmem:[#allocation7 + $0x120] sm:$0xff]
    %v127 = vld [vmem:[#allocation7 + $0x128] sm:$0xff]
    %v128 = vld [vmem:[#allocation7 + $0x130] sm:$0xff]
    %v129 = vld [vmem:[#allocation7 + $0x138] sm:$0xff]
    %v130 = vld [vmem:[#allocation7 + $0x140] sm:$0xff]
    %v131 = vld [vmem:[#allocation7 + $0x148] sm:$0xff]
    %v132 = vld [vmem:[#allocation7 + $0x150] sm:$0xff]
    %v133 = vld [vmem:[#allocation7 + $0x158] sm:$0xff]
    %v134 = vld [vmem:[#allocation7 + $0x160] sm:$0xff]
    %v135 = vld [vmem:[#allocation7 + $0x168] sm:$0xff]
    %v136 = vld [vmem:[#allocation7 + $0x170] sm:$0xff]
    %v137 = vld [vmem:[#allocation7 + $0x178] sm:$0xff]
    %v138 = vlaneseq
    %v139 = vshrl.u32 %v138, 7
    %v140 = vsub.s32 0, %v139
    %v141 = vrot.slane %v86, %v140
    %142 = vmatprep.subr.mxu0 0.0
    %143 = vmatpush1.msra.mxu0 %v90
    %144 = vmatprep.subr.mxu0 0.0
    %145 = vmatpush1.msra.mxu0 %v91
    %146 = vmatprep.subr.mxu0 0.0
    %147 = vmatpush1.msra.mxu0 %v92
    %148 = vmatprep.subr.mxu0 0.0
    %149 = vmatpush1.msra.mxu0 %v93
    %150 = vmatprep.subr.mxu0 0.0
    %151 = vmatpush1.msra.mxu0 %v94
    %152 = vmatprep.subr.mxu0 0.0
    %153 = vmatpush1.msra.mxu0 %v95
    %154 = vmatprep.subr.mxu0 0.0
    %155 = vmatpush1.msra.mxu0 %v96
    %156 = vmatprep.subr.mxu0 0.0
    %157 = vmatpush1.msra.mxu0 %v97
    %158 = vmatprep.subr.mxu0 0.0
    %159 = vmatpush1.msra.mxu0 %v98
    %160 = vmatprep.subr.mxu0 0.0
    %161 = vmatpush1.msra.mxu0 %v99
    %162 = vmatprep.subr.mxu0 0.0
    %163 = vmatpush1.msra.mxu0 %v100
    %164 = vmatprep.subr.mxu0 0.0
    %165 = vmatpush1.msra.mxu0 %v101
    %166 = vmatprep.subr.mxu0 0.0
    %167 = vmatpush1.msra.mxu0 %v102
    %168 = vmatprep.subr.mxu0 0.0
    %169 = vmatpush1.msra.mxu0 %v103
    %170 = vmatprep.subr.mxu0 0.0
    %171 = vmatpush1.msra.mxu0 %v104
    %172 = vmatprep.subr.mxu0 0.0
    %173 = vmatpush1.msra.mxu0 %v105
    %174 = vmatprep.subr.mxu0 0.0
    %175 = vmatpush1.msra.mxu0 %v106
    %176 = vmatprep.subr.mxu0 0.0
    %177 = vmatpush1.msra.mxu0 %v107
    %178 = vmatprep.subr.mxu0 0.0
    %179 = vmatpush1.msra.mxu0 %v108
    %180 = vmatprep.subr.mxu0 0.0
    %181 = vmatpush1.msra.mxu0 %v109
    %182 = vmatprep.subr.mxu0 0.0
    %183 = vmatpush1.msra.mxu0 %v110
    %184 = vmatprep.subr.mxu0 0.0
    %185 = vmatpush1.msra.mxu0 %v111
    %186 = vmatprep.subr.mxu0 0.0
    %187 = vmatpush1.msra.mxu0 %v112
    %188 = vmatprep.subr.mxu0 0.0
    %189 = vmatpush1.msra.mxu0 %v113
    %190 = vmatprep.subr.mxu0 0.0
    %191 = vmatpush1.msra.mxu0 %v114
    %192 = vmatprep.subr.mxu0 0.0
    %193 = vmatpush1.msra.mxu0 %v115
    %194 = vmatprep.subr.mxu0 0.0
    %195 = vmatpush1.msra.mxu0 %v116
    %196 = vmatprep.subr.mxu0 0.0
    %197 = vmatpush1.msra.mxu0 %v117
    %198 = vmatprep.subr.mxu0 0.0
    %199 = vmatpush1.msra.mxu0 %v118
    %200 = vmatprep.subr.mxu0 0.0
    %201 = vmatpush1.msra.mxu0 %v119
    %202 = vmatprep.subr.mxu0 0.0
    %203 = vmatpush1.msra.mxu0 %v120
    %204 = vmatprep.subr.mxu0 0.0
    %205 = vmatpush1.msra.mxu0 %v121
    %206 = vmatprep.mubr.f32.mxu0 %v88
    %207 = vmatmul.mubr.f32.gmra.mrb[0].mxu0 %v87
    %v208 = vpop.f32.mrb[0].mxu0
    %v209 = vadd.f32 %v141, %v208
    %v210 = vpop.f32.mrb[0].mxu0
    %211 = vdwg.mxu0
    %212 = vmatprep.subr.mxu0 0.0
    %213 = vmatpush1.msra.mxu0 %v122
    %214 = vmatprep.subr.mxu0 0.0
    %215 = vmatpush1.msra.mxu0 %v123
    %216 = vmatprep.subr.mxu0 0.0
    %217 = vmatpush1.msra.mxu0 %v124
    %218 = vmatprep.subr.mxu0 0.0
    %219 = vmatpush1.msra.mxu0 %v125
    %220 = vmatprep.subr.mxu0 0.0
    %221 = vmatpush1.msra.mxu0 %v126
    %222 = vmatprep.subr.mxu0 0.0
    %223 = vmatpush1.msra.mxu0 %v127
    %224 = vmatprep.subr.mxu0 0.0
    %225 = vmatpush1.msra.mxu0 %v128
    %226 = vmatprep.subr.mxu0 0.0
    %227 = vmatpush1.msra.mxu0 %v129
    %228 = vmatprep.subr.mxu0 0.0
    %229 = vmatpush1.msra.mxu0 %v130
    %230 = vmatprep.subr.mxu0 0.0
    %231 = vmatpush1.msra.mxu0 %v131
    %232 = vmatprep.subr.mxu0 0.0
    %233 = vmatpush1.msra.mxu0 %v132
    %234 = vmatprep.subr.mxu0 0.0
    %235 = vmatpush1.msra.mxu0 %v133
    %236 = vmatprep.subr.mxu0 0.0
    %237 = vmatpush1.msra.mxu0 %v134
    %238 = vmatprep.subr.mxu0 0.0
    %239 = vmatpush1.msra.mxu0 %v135
    %240 = vmatprep.subr.mxu0 0.0
    %241 = vmatpush1.msra.mxu0 %v136
    %242 = vmatprep.subr.mxu0 0.0
    %243 = vmatpush1.msra.mxu0 %v137
    %244 = vmatprep.subr.mxu0 0.0
    %245 = vmatpush1.msra.mxu0 0.0
    %246 = vmatprep.subr.mxu0 0.0
    %247 = vmatpush1.msra.mxu0 0.0
    %248 = vmatprep.subr.mxu0 0.0
    %249 = vmatpush1.msra.mxu0 0.0
    %250 = vmatprep.subr.mxu0 0.0
    %251 = vmatpush1.msra.mxu0 0.0
    %252 = vmatprep.subr.mxu0 0.0
    %253 = vmatpush1.msra.mxu0 0.0
    %254 = vmatprep.subr.mxu0 0.0
    %255 = vmatpush1.msra.mxu0 0.0
    %256 = vmatprep.subr.mxu0 0.0
    %257 = vmatpush1.msra.mxu0 0.0
    %258 = vmatprep.subr.mxu0 0.0
    %259 = vmatpush1.msra.mxu0 0.0
    %260 = vmatprep.subr.mxu0 0.0
    %261 = vmatpush1.msra.mxu0 0.0
    %262 = vmatprep.subr.mxu0 0.0
    %263 = vmatpush1.msra.mxu0 0.0
    %264 = vmatprep.subr.mxu0 0.0
    %265 = vmatpush1.msra.mxu0 0.0
    %266 = vmatprep.subr.mxu0 0.0
    %267 = vmatpush1.msra.mxu0 0.0
    %268 = vmatprep.subr.mxu0 0.0
    %269 = vmatpush1.msra.mxu0 0.0
    %270 = vmatprep.subr.mxu0 0.0
    %271 = vmatpush1.msra.mxu0 0.0
    %272 = vmatprep.subr.mxu0 0.0
    %273 = vmatpush1.msra.mxu0 0.0
    %274 = vmatprep.subr.mxu0 0.0
    %275 = vmatpush1.msra.mxu0 0.0
    %276 = vmatprep.mubr.f32.mxu0 0.0
    %277 = vmatmul.mubr.f32.gmra.mrb[0].mxu0 %v89
    %v278 = vpop.f32.mrb[0].mxu0
    %v279 = vadd.f32 %v209, %v278
    %v280 = vpop.f32.mrb[0].mxu0
    %281 = vdwg.mxu0
    %v282 = vand.u32 2147483647, %v279
    %vm283 = vcmp.le.f32.partialorder %v282, 0.7853982
    %vm284 = vcmp.lt.s32.totalorder %v279, 0
    %v285 = vand.u32 %v279, 2139095040
    %v286 = vshrl.u32 %v285, 23
    %v287 = vsub.s32 %v286, 127
    %v288 = vand.u32 2147483647, %v279
    %v289 = vand.u32 %v288, 8388607
    %v290 = vor.u32 %v289, 8388608
    %v291 = vsub.s32 0, %v290
    %v292 = vadd.s32 %v287, 1
    %vm293 = vcmp.gt.s32.totalorder %v292, 0
    %v294 = vsel %vm293, %v292, 0
    %v295 = vshrl.u32 %v294, 5
    %v296 = vand.u32 %v294, 31
    %v297 = vsub.s32 32, %v296
    %v298 = vshrl.u32 683565275, %v297
    %v299 = vshll.u32 683565275, %v296
    %v300 = vshrl.u32 2475754826, %v297
    %v301 = vor.u32 %v299, %v300
    %v302 = vshll.u32 2475754826, %v296
    %v303 = vshrl.u32 2131351028, %v297
    %v304 = vor.u32 %v302, %v303
    %v305 = vshll.u32 2131351028, %v296
    %v306 = vshrl.u32 2102212464, %v297
    %v307 = vor.u32 %v305, %v306
    %v308 = vshll.u32 2102212464, %v296
    %v309 = vshrl.u32 920167782, %v297
    %v310 = vor.u32 %v308, %v309
    %v311 = vshll.u32 920167782, %v296
    %v312 = vshrl.u32 1326507024, %v297
    %v313 = vor.u32 %v311, %v312
    %vm314 = vcmp.lt.s32.totalorder %v295, 1
    %vm315 = vcmp.lt.s32.totalorder %v295, 2
    %vm316 = vcmp.lt.s32.totalorder %v295, 3
    %vm317 = vcmp.lt.s32.totalorder %v295, 4
    %v318 = vsel %vm314, %v298, %v301
    %v319 = vsel %vm317, %v307, 2102212464
    %v320 = vsel %vm316, %v304, %v319
    %v321 = vsel %vm315, %v318, %v320
    %v322 = vsel %vm314, %v301, %v304
    %v323 = vsel %vm317, %v310, 920167782
    %v324 = vsel %vm316, %v307, %v323
    %v325 = vsel %vm315, %v322, %v324
    %v326 = vsel %vm314, %v304, %v307
    %v327 = vsel %vm317, %v313, 1326507024
    %v328 = vsel %vm316, %v310, %v327
    %v329 = vsel %vm315, %v326, %v328
    %v330 = vshll.u32 %v290, 8
    %v331 = vmul.u32.u64.compose %v330, %v329
    %v332 = vextract.low.u32 %v331
    %v333 = vextract.high.u32 %v331
    %v334 = vmul.u32.u64.compose %v330, %v325
    %v335 = vextract.low.u32 %v334
    %v336 = vextract.high.u32 %v334
    %v337 = vmul.u32 %v330, %v321
    %v338 = vadd.s32 %v333, %v335
    %vm339 = vc.u32 %v333, %v335
    %v340 = vadd.s32 %v336, 1
    %v341 = vsel %vm339, %v340, %v336
    %v342 = vadd.s32 %v337, %v341
    %v343 = vadd.s32 %v342, 536870912
    %v344 = vshrl.u32 %v343, 30
    %v345 = vshll.u32 %v344, 30
    %v346 = vsub.s32 %v342, %v345
    %vm347 = vcmp.lt.s32.totalorder %v346, 0
    %v348 = vsub.s32 0, %v346
    %v349 = vsel %vm347, %v348, %v346
    %v350 = vclz %v349
    %v351 = vsub.s32 %v350, 2
    %vm352 = vcmp.gt.s32.totalorder 0, %v351
    %v353 = vsel %vm352, 0, %v351
    %v354 = vsub.s32 32, %v353
    %v355 = vshll.u32 %v346, %v353
    %v356 = vshrl.u32 %v338, %v354
    %v357 = vor.u32 %v355, %v356
    %v358 = vsub.s32 4294967266, %v353
    %v359 = vadd.s32 %v358, 127
    %v360 = vshll.u32 %v359, 23
    %v361 = vor.u32 4788187, %v360
    %v362 = vand.u32 2147483647, %v361
    %v364 = vcvt.s32.f32 %v357
    %v365 = vmul.f32 %v364, %v362
    %v366 = vxor.u32 %v365, 2147483648
    %v367 = vsel %vm284, %v366, %v365
    %v368 = vsub.s32 4, %v344
    %v369 = vsel %vm284, %v368, %v344
    %v370 = vsel %vm283, %v279, %v367
    %v371 = vsel %vm283, 0, %v369
    %v372 = vcosq.f32.pop %v370
    %v373 = vsinq.f32.pop %v370
    %vm374 = vweird.f32 %v279
    %v375 = vand.u32 %v371, 3
    %vm376 = vcmp.lt.s32.totalorder %v375, 2
    %vm377 = vcmp.eq.s32.totalorder %v375, 0
    %v378 = vxor.u32 %v373, 2147483648
    %v379 = vsel %vm377, %v372, %v378
    %vm380 = vcmp.eq.s32.totalorder %v375, 2
    %v381 = vxor.u32 %v372, 2147483648
    %v382 = vsel %vm380, %v381, %v373
    %v383 = vsel %vm376, %v379, %v382
    %v384 = vsel %vm374, nan, %v383
    %v385 = vsub.f32 -1.0, %v86
    %v386 = vlaneseq
    %v387 = vshrl.u32 %v386, 7
    %v388 = vsub.s32 1, %v387
    %v389 = vrot.slane %v385, %v388
    %v390 = vadd.f32 %v389, %v384
    %v391 = vmul.f32 %v384, 2.0
    %v392 = vmul.f32 %v391, %v384
    %v393 = vsub.f32 %v392, 1.0
    %v394 = vlaneseq
    %v395 = vshrl.u32 %v394, 7
    %v396 = vsub.s32 1, %v395
    %v397 = vrot.slane %v86, %v396
    %v398 = vmul.f32 %v397, %v393
    %v399 = vadd.f32 %v390, %v398
    %v400 = vlaneseq
    %v401 = vshrl.u32 %v400, 7
    %v402 = vsub.s32 2, %v401
    %v403 = vrot.slane %v86, %v402
    %v404 = vmul.f32 %v403, %v399
    %v405 = vadd.f32 %v404, 1.0
    %v406 = vld [vmem:[#allocation2] sm:$0xff]
    %v407 = vld [vmem:[#allocation2 + $0x8] sm:$0xff]
    %v408 = vld [vmem:[#allocation2 + $0x10] sm:$0xff]
    %v409 = vld [vmem:[#allocation2 + $0x18] sm:$0xff]
    %v410 = vld [vmem:[#allocation2 + $0x20] sm:$0xff]
    %v411 = vld [vmem:[#allocation2 + $0x28] sm:$0xff]
    %v412 = vld [vmem:[#allocation2 + $0x30] sm:$0xff]
    %v413 = vld [vmem:[#allocation2 + $0x38] sm:$0xff]
    %v414 = vld [vmem:[#allocation2 + $0x40] sm:$0xff]
    %v415 = vld [vmem:[#allocation2 + $0x48] sm:$0xff]
    %v416 = vld [vmem:[#allocation2 + $0x50] sm:$0xff]
    %v417 = vld [vmem:[#allocation2 + $0x58] sm:$0xff]
    %v418 = vld [vmem:[#allocation2 + $0x60] sm:$0xff]
    %v419 = vld [vmem:[#allocation2 + $0x68] sm:$0xff]
    %v420 = vld [vmem:[#allocation2 + $0x70] sm:$0xff]
    %v421 = vld [vmem:[#allocation2 + $0x78] sm:$0xff]
    %422 = vmatprep.subr.mxu0 0.0
    %423 = vmatpush1.msra.mxu0 %v406
    %424 = vmatprep.subr.mxu0 0.0
    %425 = vmatpush1.msra.mxu0 %v407
    %426 = vmatprep.subr.mxu0 0.0
    %427 = vmatpush1.msra.mxu0 %v408
    %428 = vmatprep.subr.mxu0 0.0
    %429 = vmatpush1.msra.mxu0 %v409
    %430 = vmatprep.subr.mxu0 0.0
    %431 = vmatpush1.msra.mxu0 %v410
    %432 = vmatprep.subr.mxu0 0.0
    %433 = vmatpush1.msra.mxu0 %v411
    %434 = vmatprep.subr.mxu0 0.0
    %435 = vmatpush1.msra.mxu0 %v412
    %436 = vmatprep.subr.mxu0 0.0
    %437 = vmatpush1.msra.mxu0 %v413
    %438 = vmatprep.subr.mxu0 0.0
    %439 = vmatpush1.msra.mxu0 %v414
    %440 = vmatprep.subr.mxu0 0.0
    %441 = vmatpush1.msra.mxu0 %v415
    %442 = vmatprep.subr.mxu0 0.0
    %443 = vmatpush1.msra.mxu0 %v416
    %444 = vmatprep.subr.mxu0 0.0
    %445 = vmatpush1.msra.mxu0 %v417
    %446 = vmatprep.subr.mxu0 0.0
    %447 = vmatpush1.msra.mxu0 %v418
    %448 = vmatprep.subr.mxu0 0.0
    %449 = vmatpush1.msra.mxu0 %v419
    %450 = vmatprep.subr.mxu0 0.0
    %451 = vmatpush1.msra.mxu0 %v420
    %452 = vmatprep.subr.mxu0 0.0
    %453 = vmatpush1.msra.mxu0 %v421
    %454 = vmatprep.subr.mxu0 0.0
    %455 = vmatpush1.msra.mxu0 0.0
    %456 = vmatprep.subr.mxu0 0.0
    %457 = vmatpush1.msra.mxu0 0.0
    %458 = vmatprep.subr.mxu0 0.0
    %459 = vmatpush1.msra.mxu0 0.0
    %460 = vmatprep.subr.mxu0 0.0
    %461 = vmatpush1.msra.mxu0 0.0
    %462 = vmatprep.subr.mxu0 0.0
    %463 = vmatpush1.msra.mxu0 0.0
    %464 = vmatprep.subr.mxu0 0.0
    %465 = vmatpush1.msra.mxu0 0.0
    %466 = vmatprep.subr.mxu0 0.0
    %467 = vmatpush1.msra.mxu0 0.0
    %468 = vmatprep.subr.mxu0 0.0
    %469 = vmatpush1.msra.mxu0 0.0
    %470 = vmatprep.subr.mxu0 0.0
    %471 = vmatpush1.msra.mxu0 0.0
    %472 = vmatprep.subr.mxu0 0.0
    %473 = vmatpush1.msra.mxu0 0.0
    %474 = vmatprep.subr.mxu0 0.0
    %475 = vmatpush1.msra.mxu0 0.0
    %476 = vmatprep.subr.mxu0 0.0
    %477 = vmatpush1.msra.mxu0 0.0
    %478 = vmatprep.subr.mxu0 0.0
    %479 = vmatpush1.msra.mxu0 0.0
    %480 = vmatprep.subr.mxu0 0.0
    %481 = vmatpush1.msra.mxu0 0.0
    %482 = vmatprep.subr.mxu0 0.0
    %483 = vmatpush1.msra.mxu0 0.0
    %484 = vmatprep.subr.mxu0 0.0
    %485 = vmatpush1.msra.mxu0 0.0
    %486 = vmatprep.mubr.f32.mxu0 0.0
    %487 = vmatmul.mubr.f32.gmra.mrb[0].mxu0 %v405
    %v488 = vpop.f32.mrb[0].mxu0
    %v489 = vadd.f32 0.0, %v488
    %v490 = vpop.f32.mrb[0].mxu0
    %491 = vdwg.mxu0
    %v492 = vld [vmem:[#allocation4] sm:$0xff]
    %v493 = vld [vmem:[#allocation4 + $0x8] sm:$0xff]
    %v494 = vld [vmem:[#allocation4 + $0x10] sm:$0xff]
    %v495 = vld [vmem:[#allocation4 + $0x18] sm:$0xff]
    %v496 = vld [vmem:[#allocation4 + $0x20] sm:$0xff]
    %v497 = vld [vmem:[#allocation4 + $0x28] sm:$0xff]
    %v498 = vld [vmem:[#allocation4 + $0x30] sm:$0xff]
    %v499 = vld [vmem:[#allocation4 + $0x38] sm:$0xff]
    %v500 = vld [vmem:[#allocation4 + $0x40] sm:$0xff]
    %v501 = vld [vmem:[#allocation4 + $0x48] sm:$0xff]
    %v502 = vld [vmem:[#allocation4 + $0x50] sm:$0xff]
    %v503 = vld [vmem:[#allocation4 + $0x58] sm:$0xff]
    %v504 = vld [vmem:[#allocation4 + $0x60] sm:$0xff]
    %v505 = vld [vmem:[#allocation4 + $0x68] sm:$0xff]
    %v506 = vld [vmem:[#allocation4 + $0x70] sm:$0xff]
    %v507 = vld [vmem:[#allocation4 + $0x78] sm:$0xff]
    %508 = vmatprep.subr.mxu0 0.0
    %509 = vmatpush1.msra.mxu0 %v492
    %510 = vmatprep.subr.mxu0 0.0
    %511 = vmatpush1.msra.mxu0 %v493
    %512 = vmatprep.subr.mxu0 0.0
    %513 = vmatpush1.msra.mxu0 %v494
    %514 = vmatprep.subr.mxu0 0.0
    %515 = vmatpush1.msra.mxu0 %v495
    %516 = vmatprep.subr.mxu0 0.0
    %517 = vmatpush1.msra.mxu0 %v496
    %518 = vmatprep.subr.mxu0 0.0
    %519 = vmatpush1.msra.mxu0 %v497
    %520 = vmatprep.subr.mxu0 0.0
    %521 = vmatpush1.msra.mxu0 %v498
    %522 = vmatprep.subr.mxu0 0.0
    %523 = vmatpush1.msra.mxu0 %v499
    %524 = vmatprep.subr.mxu0 0.0
    %525 = vmatpush1.msra.mxu0 %v500
    %526 = vmatprep.subr.mxu0 0.0
    %527 = vmatpush1.msra.mxu0 %v501
    %528 = vmatprep.subr.mxu0 0.0
    %529 = vmatpush1.msra.mxu0 %v502
    %530 = vmatprep.subr.mxu0 0.0
    %531 = vmatpush1.msra.mxu0 %v503
    %532 = vmatprep.subr.mxu0 0.0
    %533 = vmatpush1.msra.mxu0 %v504
    %534 = vmatprep.subr.mxu0 0.0
    %535 = vmatpush1.msra.mxu0 %v505
    %536 = vmatprep.subr.mxu0 0.0
    %537 = vmatpush1.msra.mxu0 %v506
    %538 = vmatprep.subr.mxu0 0.0
    %539 = vmatpush1.msra.mxu0 %v507
    %540 = vmatprep.subr.mxu0 0.0
    %541 = vmatpush1.msra.mxu0 0.0
    %542 = vmatprep.subr.mxu0 0.0
    %543 = vmatpush1.msra.mxu0 0.0
    %544 = vmatprep.subr.mxu0 0.0
    %545 = vmatpush1.msra.mxu0 0.0
    %546 = vmatprep.subr.mxu0 0.0
    %547 = vmatpush1.msra.mxu0 0.0
    %548 = vmatprep.subr.mxu0 0.0
    %549 = vmatpush1.msra.mxu0 0.0
    %550 = vmatprep.subr.mxu0 0.0
    %551 = vmatpush1.msra.mxu0 0.0
    %552 = vmatprep.subr.mxu0 0.0
    %553 = vmatpush1.msra.mxu0 0.0
    %554 = vmatprep.subr.mxu0 0.0
    %555 = vmatpush1.msra.mxu0 0.0
    %556 = vmatprep.subr.mxu0 0.0
    %557 = vmatpush1.msra.mxu0 0.0
    %558 = vmatprep.subr.mxu0 0.0
    %559 = vmatpush1.msra.mxu0 0.0
    %560 = vmatprep.subr.mxu0 0.0
    %561 = vmatpush1.msra.mxu0 0.0
    %562 = vmatprep.subr.mxu0 0.0
    %563 = vmatpush1.msra.mxu0 0.0
    %564 = vmatprep.subr.mxu0 0.0
    %565 = vmatpush1.msra.mxu0 0.0
    %566 = vmatprep.subr.mxu0 0.0
    %567 = vmatpush1.msra.mxu0 0.0
    %568 = vmatprep.subr.mxu0 0.0
    %569 = vmatpush1.msra.mxu0 0.0
    %570 = vmatprep.subr.mxu0 0.0
    %571 = vmatpush1.msra.mxu0 0.0
    %572 = vmatprep.mubr.f32.mxu0 0.0
    %573 = vmatmul.mubr.f32.gmra.mrb[0].mxu0 %v405
    %v574 = vpop.f32.mrb[0].mxu0
    %v575 = vadd.f32 0.0, %v574
    %v576 = vpop.f32.mrb[0].mxu0
    %577 = vdwg.mxu0
    %v578 = vsub.f32 %v489, %v575
    %v579 = vmul.f32 %v578, %v578
    %v580 = vld [vmem:[#allocation6] sm:$0xff]
    %v581 = vld [vmem:[#allocation6 + $0x8] sm:$0xff]
    %v582 = vld [vmem:[#allocation6 + $0x10] sm:$0xff]
    %v583 = vld [vmem:[#allocation6 + $0x18] sm:$0xff]
    %v584 = vld [vmem:[#allocation6 + $0x20] sm:$0xff]
    %v585 = vld [vmem:[#allocation6 + $0x28] sm:$0xff]
    %v586 = vld [vmem:[#allocation6 + $0x30] sm:$0xff]
    %v587 = vld [vmem:[#allocation6 + $0x38] sm:$0xff]
    %v588 = vld [vmem:[#allocation6 + $0x40] sm:$0xff]
    %v589 = vld [vmem:[#allocation6 + $0x48] sm:$0xff]
    %v590 = vld [vmem:[#allocation6 + $0x50] sm:$0xff]
    %v591 = vld [vmem:[#allocation6 + $0x58] sm:$0xff]
    %v592 = vld [vmem:[#allocation6 + $0x60] sm:$0xff]
    %v593 = vld [vmem:[#allocation6 + $0x68] sm:$0xff]
    %v594 = vld [vmem:[#allocation6 + $0x70] sm:$0xff]
    %v595 = vld [vmem:[#allocation6 + $0x78] sm:$0xff]
    %596 = vmatprep.subr.mxu0 0.0
    %597 = vmatpush1.msra.mxu0 %v580
    %598 = vmatprep.subr.mxu0 0.0
    %599 = vmatpush1.msra.mxu0 %v581
    %600 = vmatprep.subr.mxu0 0.0
    %601 = vmatpush1.msra.mxu0 %v582
    %602 = vmatprep.subr.mxu0 0.0
    %603 = vmatpush1.msra.mxu0 %v583
    %604 = vmatprep.subr.mxu0 0.0
    %605 = vmatpush1.msra.mxu0 %v584
    %606 = vmatprep.subr.mxu0 0.0
    %607 = vmatpush1.msra.mxu0 %v585
    %608 = vmatprep.subr.mxu0 0.0
    %609 = vmatpush1.msra.mxu0 %v586
    %610 = vmatprep.subr.mxu0 0.0
    %611 = vmatpush1.msra.mxu0 %v587
    %612 = vmatprep.subr.mxu0 0.0
    %613 = vmatpush1.msra.mxu0 %v588
    %614 = vmatprep.subr.mxu0 0.0
    %615 = vmatpush1.msra.mxu0 %v589
    %616 = vmatprep.subr.mxu0 0.0
    %617 = vmatpush1.msra.mxu0 %v590
    %618 = vmatprep.subr.mxu0 0.0
    %619 = vmatpush1.msra.mxu0 %v591
    %620 = vmatprep.subr.mxu0 0.0
    %621 = vmatpush1.msra.mxu0 %v592
    %622 = vmatprep.subr.mxu0 0.0
    %623 = vmatpush1.msra.mxu0 %v593
    %624 = vmatprep.subr.mxu0 0.0
    %625 = vmatpush1.msra.mxu0 %v594
    %626 = vmatprep.subr.mxu0 0.0
    %627 = vmatpush1.msra.mxu0 %v595
    %628 = vmatprep.subr.mxu0 0.0
    %629 = vmatpush1.msra.mxu0 0.0
    %630 = vmatprep.subr.mxu0 0.0
    %631 = vmatpush1.msra.mxu0 0.0
    %632 = vmatprep.subr.mxu0 0.0
    %633 = vmatpush1.msra.mxu0 0.0
    %634 = vmatprep.subr.mxu0 0.0
    %635 = vmatpush1.msra.mxu0 0.0
    %636 = vmatprep.subr.mxu0 0.0
    %637 = vmatpush1.msra.mxu0 0.0
    %638 = vmatprep.subr.mxu0 0.0
    %639 = vmatpush1.msra.mxu0 0.0
    %640 = vmatprep.subr.mxu0 0.0
    %641 = vmatpush1.msra.mxu0 0.0
    %642 = vmatprep.subr.mxu0 0.0
    %643 = vmatpush1.msra.mxu0 0.0
    %644 = vmatprep.subr.mxu0 0.0
    %645 = vmatpush1.msra.mxu0 0.0
    %646 = vmatprep.subr.mxu0 0.0
    %647 = vmatpush1.msra.mxu0 0.0
    %648 = vmatprep.subr.mxu0 0.0
    %649 = vmatpush1.msra.mxu0 0.0
    %650 = vmatprep.subr.mxu0 0.0
    %651 = vmatpush1.msra.mxu0 0.0
    %652 = vmatprep.subr.mxu0 0.0
    %653 = vmatpush1.msra.mxu0 0.0
    %654 = vmatprep.subr.mxu0 0.0
    %655 = vmatpush1.msra.mxu0 0.0
    %656 = vmatprep.subr.mxu0 0.0
    %657 = vmatpush1.msra.mxu0 0.0
    %658 = vmatprep.subr.mxu0 0.0
    %659 = vmatpush1.msra.mxu0 0.0
    %660 = vmatprep.mubr.f32.mxu0 0.0
    %661 = vmatmul.mubr.f32.gmra.mrb[0].mxu0 %v579
    %v662 = vpop.f32.mrb[0].mxu0
    %v663 = vadd.f32 1e-05, %v662
    %v664 = vpop.f32.mrb[0].mxu0
    %665 = vdwg.mxu0
    %v666 = vrsqrt.pop %v663
    %v667 = vmul.f32 %v578, %v666
    %v668 = vlaneseq
    %v669 = vshrl.u32 %v668, 7
    %v670 = vsub.s32 3, %v669
    %v671 = vrot.slane %v86, %v670
    %v672 = vmul.f32 %v667, %v671
    %v673 = vlaneseq
    %v674 = vshrl.u32 %v673, 7
    %v675 = vsub.s32 4, %v674
    %v676 = vrot.slane %v86, %v675
    %v677 = vadd.f32 %v672, %v676
    %678 = vst [vmem:[%s9] sm:$0xff] %v677
    %v679 = vld [vmem:[%s6] sm:$0xff]
    %v680 = vld [vmem:[%s6 + $0x8] sm:$0xff]
    %v681 = vld [vmem:[%s6 + $0x10] sm:$0xff]
    %v682 = vld [vmem:[%s6 + $0x18] sm:$0xff]
    %v683 = vld [vmem:[%s6 + $0x20] sm:$0xff]
    %v684 = vld [vmem:[%s6 + $0x28] sm:$0xff]
    %v685 = vld [vmem:[%s6 + $0x30] sm:$0xff]
    %v686 = vld [vmem:[%s6 + $0x38] sm:$0xff]
    %v687 = vld [vmem:[%s6 + $0x40] sm:$0xff]
    %v688 = vld [vmem:[%s6 + $0x48] sm:$0xff]
    %v689 = vld [vmem:[%s6 + $0x50] sm:$0xff]
    %v690 = vld [vmem:[%s6 + $0x58] sm:$0xff]
    %v691 = vld [vmem:[%s6 + $0x60] sm:$0xff]
    %v692 = vld [vmem:[%s6 + $0x68] sm:$0xff]
    %v693 = vld [vmem:[%s6 + $0x70] sm:$0xff]
    %v694 = vld [vmem:[%s6 + $0x78] sm:$0xff]
    %v695 = vld [vmem:[%s6 + $0x80] sm:$0xff]
    %v696 = vld [vmem:[%s6 + $0x88] sm:$0xff]
    %v697 = vld [vmem:[%s6 + $0x90] sm:$0xff]
    %v698 = vld [vmem:[%s6 + $0x98] sm:$0xff]
    %v699 = vld [vmem:[%s6 + $0xa0] sm:$0xff]
    %v700 = vld [vmem:[%s6 + $0xa8] sm:$0xff]
    %v701 = vld [vmem:[%s6 + $0xb0] sm:$0xff]
    %v702 = vld [vmem:[%s6 + $0xb8] sm:$0xff]
    %v703 = vld [vmem:[%s6 + $0xc0] sm:$0xff]
    %v704 = vld [vmem:[%s6 + $0xc8] sm:$0xff]
    %v705 = vld [vmem:[%s6 + $0xd0] sm:$0xff]
    %v706 = vld [vmem:[%s6 + $0xd8] sm:$0xff]
    %v707 = vld [vmem:[%s6 + $0xe0] sm:$0xff]
    %v708 = vld [vmem:[%s6 + $0xe8] sm:$0xff]
    %v709 = vld [vmem:[%s6 + $0xf0] sm:$0xff]
    %v710 = vld [vmem:[%s6 + $0xf8] sm:$0xff]
    %v711 = vld [vmem:[%s7] sm:$0x3]
    %v713 = vlaneseq
    %v714 = vshrl.u32 %v713, 7
    %v715 = vsub.s32 0, %v714
    %v716 = vrot.slane %v711, %v715
    %v717 = vlaneseq
    %v718 = vshrl.u32 %v717, 7
    %v719 = vsub.s32 1, %v718
    %v720 = vrot.slane %v711, %v719
    %723 = vmatprep.subr.mxu0 %v680
    %724 = vmatpush1.msra.mxu0 %v679
    %725 = vmatprep.subr.mxu0 %v682
    %726 = vmatpush1.msra.mxu0 %v681
    %727 = vmatprep.subr.mxu0 %v684
    %728 = vmatpush1.msra.mxu0 %v683
    %729 = vmatprep.subr.mxu0 %v686
    %730 = vmatpush1.msra.mxu0 %v685
    %731 = vmatprep.subr.mxu0 %v688
    %732 = vmatpush1.msra.mxu0 %v687
    %733 = vmatprep.subr.mxu0 %v690
    %734 = vmatpush1.msra.mxu0 %v689
    %735 = vmatprep.subr.mxu0 %v692
    %736 = vmatpush1.msra.mxu0 %v691
    %737 = vmatprep.subr.mxu0 %v694
    %738 = vmatpush1.msra.mxu0 %v693
    %739 = vmatprep.subr.mxu0 %v696
    %740 = vmatpush1.msra.mxu0 %v695
    %741 = vmatprep.subr.mxu0 %v698
    %742 = vmatpush1.msra.mxu0 %v697
    %743 = vmatprep.subr.mxu0 %v700
    %744 = vmatpush1.msra.mxu0 %v699
    %745 = vmatprep.subr.mxu0 %v702
    %746 = vmatpush1.msra.mxu0 %v701
    %747 = vmatprep.subr.mxu0 %v704
    %748 = vmatpush1.msra.mxu0 %v703
    %749 = vmatprep.subr.mxu0 %v706
    %750 = vmatpush1.msra.mxu0 %v705
    %751 = vmatprep.subr.mxu0 %v708
    %752 = vmatpush1.msra.mxu0 %v707
    %753 = vmatprep.subr.mxu0 %v710
    %754 = vmatpush1.msra.mxu0 %v709
    %755 = vmatprep.subr.mxu0 0.0
    %756 = vmatpush1.msra.mxu0 0.0
    %757 = vmatprep.subr.mxu0 0.0
    %758 = vmatpush1.msra.mxu0 0.0
    %759 = vmatprep.subr.mxu0 0.0
    %760 = vmatpush1.msra.mxu0 0.0
    %761 = vmatprep.subr.mxu0 0.0
    %762 = vmatpush1.msra.mxu0 0.0
    %763 = vmatprep.subr.mxu0 0.0
    %764 = vmatpush1.msra.mxu0 0.0
    %765 = vmatprep.subr.mxu0 0.0
    %766 = vmatpush1.msra.mxu0 0.0
    %767 = vmatprep.subr.mxu0 0.0
    %768 = vmatpush1.msra.mxu0 0.0
    %769 = vmatprep.subr.mxu0 0.0
    %770 = vmatpush1.msra.mxu0 0.0
    %771 = vmatprep.subr.mxu0 0.0
    %772 = vmatpush1.msra.mxu0 0.0
    %773 = vmatprep.subr.mxu0 0.0
    %774 = vmatpush1.msra.mxu0 0.0
    %775 = vmatprep.subr.mxu0 0.0
    %776 = vmatpush1.msra.mxu0 0.0
    %777 = vmatprep.subr.mxu0 0.0
    %778 = vmatpush1.msra.mxu0 0.0
    %779 = vmatprep.subr.mxu0 0.0
    %780 = vmatpush1.msra.mxu0 0.0
    %781 = vmatprep.subr.mxu0 0.0
    %782 = vmatpush1.msra.mxu0 0.0
    %783 = vmatprep.subr.mxu0 0.0
    %784 = vmatpush1.msra.mxu0 0.0
    %785 = vmatprep.subr.mxu0 0.0
    %786 = vmatpush1.msra.mxu0 0.0
    %787 = vmatprep.mubr.f32.mxu0 0.0
    %788 = vmatmul.mubr.f32.gmra.mrb[0].mxu0 %v489
    %v789 = vpop.f32.mrb[0].mxu0
    %v790 = vadd.f32 %v716, %v789
    %v791 = vpop.f32.mrb[0].mxu0
    %v792 = vadd.f32 %v720, %v791
    %793 = vdwg.mxu0
    %794 = vst [vmem:[%s8] sm:$0xff] %v790
    %795 = vst [vmem:[%s8 + $0x8] sm:$0xff] %v792
    // Predicated region
    $region50: #{multihead_lima_forward.1} parent=1 // pred_check
      _
    $region51: #{multihead_lima_forward.1} parent=1 // pred_check_branch
      %797 = sbr.rel (0) target = $region53
    $region52: #{multihead_lima_forward.1} parent=1 // pred_region
      _
    $region53: #{multihead_lima_forward.1} parent=1 // pred_fallthru
      _
    // Predicated region
    $region54: #{multihead_lima_forward.1} parent=1 // pred_check
      _
    $region55: #{multihead_lima_forward.1} parent=1 // pred_check_branch
      %799 = sbr.rel (0) target = $region57
    $region56: #{multihead_lima_forward.1} parent=1 // pred_region
      _
    $region57: #{multihead_lima_forward.1} parent=1 // pred_fallthru
      _
    // Predicated region
    $region58: #{multihead_lima_forward.1} parent=1 // pred_check
      _
    $region59: #{multihead_lima_forward.1} parent=1 // pred_check_branch
      %801 = sbr.rel (0) target = $region61
    $region60: #{multihead_lima_forward.1} parent=1 // pred_region
      _
    $region61: #{multihead_lima_forward.1} parent=1 // pred_fallthru
      _
    // Predicated region
    $region62: #{multihead_lima_forward.1} parent=1 // pred_check
      _
    $region63: #{multihead_lima_forward.1} parent=1 // pred_check_branch
      %803 = sbr.rel (0) target = $region65
    $region64: #{multihead_lima_forward.1} parent=1 // pred_region
      _
    $region65: #{multihead_lima_forward.1} parent=1 // pred_fallthru
      _
    %804 = vsyncpa [#allocation3], 1
    %805 = vsyncpa [#allocation5], 1
    %806 = vsyncpa [#allocation8], 1

</llo_original>
